<compile_context>
chip_gen: v5e
topology: v5e:2x2
jax: 0.10.0
libtpu: 0.0.40
codegen_flags: <defaults>
</compile_context>

<pallas_src>
import math
import functools

import jax
import jax.numpy as jnp
import numpy as np
from jax.experimental import pallas as pl
from jax.experimental.pallas import tpu as pltpu


# ----------------------------- kernel helpers -----------------------------

def _layernorm(h, gamma, beta, eps=1e-5):
    mu = jnp.mean(h, axis=-1, keepdims=True)
    var = jnp.mean((h - mu) ** 2, axis=-1, keepdims=True)
    return (h - mu) * jax.lax.rsqrt(var + eps) * gamma + beta


def _gelu_tanh(x):
    # matches torch.nn.GELU(approximate='tanh')
    c = math.sqrt(2.0 / math.pi)
    return 0.5 * x * (1.0 + jnp.tanh(c * (x + 0.044715 * x * x * x)))


# ------------------------- stage 1: LN1 + QKV proj -------------------------

def qkv_kernel(x_ref, ln1g_ref, ln1b_ref, w_ref, bias_ref,
               q_out_ref, k_out_ref, v_out_ref, *, n_head):
    x = x_ref[...]                                   # (TQ, C) f32
    C = x.shape[-1]
    hd = C // n_head

    h = _layernorm(x, ln1g_ref[...], ln1b_ref[...]).astype(w_ref.dtype)
    # one full-width MXU matmul: (TQ, C) @ (C, 3C), f32 accumulation.
    qkv = jnp.dot(h, w_ref[...], preferred_element_type=jnp.float32) \
        + bias_ref[...]                              # (TQ, 3C) f32

    # scatter into head-major (H, TQ, hd) outputs (pure data movement, no matmuls).
    for hh in range(n_head):
        lo = hh * hd
        q_out_ref[hh, :, :] = qkv[:, lo:lo + hd].astype(q_out_ref.dtype)
        k_out_ref[hh, :, :] = qkv[:, C + lo:C + lo + hd].astype(k_out_ref.dtype)
        v_out_ref[hh, :, :] = qkv[:, 2 * C + lo:2 * C + lo + hd].astype(v_out_ref.dtype)


# --------------- stage 2: attention + proj + residual + MLP ---------------

def attn_mlp_kernel(x_ref, q_ref, k_ref, v_ref,
                    waproj_ref, baproj_ref,
                    ln2g_ref, ln2b_ref,
                    wfc_ref, bfc_ref, wmp_ref, bmp_ref,
                    o_ref):
    x = x_ref[...]                                   # (TQ, C) f32 residual stream
    q = q_ref[...]                                   # (H, TQ, hd) bf16, scale folded in
    k = k_ref[...]                                   # (H, T,  hd) bf16
    v = v_ref[...]                                   # (H, T,  hd) bf16
    n_head, TQ, hd = q.shape
    T = k.shape[1]
    C = x.shape[-1]

    # ---- batched-head causal attention (no per-head loop, no k.T) ----
    att = jnp.einsum('hqd,hkd->hqk', q, k,
                     preferred_element_type=jnp.float32)        # (H, TQ, T)

    q_start = pl.program_id(1) * TQ
    rows = jax.lax.broadcasted_iota(jnp.int32, (TQ, T), 0) + q_start
    cols = jax.lax.broadcasted_iota(jnp.int32, (TQ, T), 1)
    neg = jnp.where(rows >= cols, 0.0, -1e30).astype(jnp.float32)
    att = att + neg[None, :, :]                                  # causal mask (additive)

    m = jnp.max(att, axis=-1, keepdims=True)
    p = jnp.exp(att - m)                                         # unnormalized probs
    s = jnp.sum(p, axis=-1, keepdims=True)                       # (H, TQ, 1)

    ctx = jnp.einsum('hqk,hkd->hqd', p.astype(v.dtype), v,
                     preferred_element_type=jnp.float32)         # (H, TQ, hd)
    # normalize AFTER the P@V matmul: hd-wide scale instead of T-wide (EUP reciprocal).
    ctx = (ctx * pl.reciprocal(s, approx=True)).astype(waproj_ref.dtype)

    # output projection without concat / (H,TQ,C) intermediate: y = sum_h ctx_h @ Wproj_h
    y = jnp.zeros((TQ, C), jnp.float32)
    for hh in range(n_head):
        y = y + jnp.dot(ctx[hh], waproj_ref[hh],
                        preferred_element_type=jnp.float32)      # (TQ, C)
    y = y + baproj_ref[...]

    x = x + y                                                    # residual 1 (f32)

    # --------------------------- MLP branch ---------------------------
    h2 = _layernorm(x, ln2g_ref[...], ln2b_ref[...]).astype(wfc_ref.dtype)
    f = jnp.dot(h2, wfc_ref[...], preferred_element_type=jnp.float32) \
        + bfc_ref[...]
    f = _gelu_tanh(f)
    mlp = jnp.dot(f.astype(wmp_ref.dtype), wmp_ref[...],
                  preferred_element_type=jnp.float32) + bmp_ref[...]

    o_ref[...] = (x + mlp).astype(o_ref.dtype)                   # residual 2


# ------------------------------ the wrapper ------------------------------

def _full_spec(arr):
    nd = arr.ndim
    return pl.BlockSpec(arr.shape, lambda b, qi, _n=nd: (0,) * _n)


def gpt2_block(x, params, n_head, *, q_tile=128, compute_dtype=jnp.bfloat16):
    B, T, C = x.shape
    assert C % n_head == 0
    hd = C // n_head
    tq = q_tile if T % q_tile == 0 else T
    nq = T // tq
    scale = 1.0 / math.sqrt(hd)
    cdt = compute_dtype

    # ---- host-side (one-time) weight prep: split/scale/reshape/cast ----
    w_attn = params["w_attn"]                      # (C, 3C), columns = [q | k | v]
    b_attn = params["b_attn"]                      # (1, 3C)
    w_attn_s = jnp.concatenate([w_attn[:, :C] * scale, w_attn[:, C:]], axis=1).astype(cdt)
    b_attn_s = jnp.concatenate([b_attn[:, :C] * scale, b_attn[:, C:]], axis=1
                               ).astype(jnp.float32)
    w_aproj3 = params["w_aproj"].reshape(n_head, hd, C).astype(cdt)   # (H, hd, C)
    w_fc = params["w_fc"].astype(cdt)
    w_mproj = params["w_mproj"].astype(cdt)

    cparams = pltpu.CompilerParams(
        dimension_semantics=("parallel", "parallel"),
        vmem_limit_bytes=64 * 1024 * 1024)

    # --------------------------- stage 1 call ---------------------------
    stage1_params = [params["ln1_g"], params["ln1_b"], w_attn_s, b_attn_s]
    qkv_shape = jax.ShapeDtypeStruct((B, n_head, T, hd), cdt)
    qkv_out_spec = pl.BlockSpec((None, n_head, tq, hd), lambda b, qi: (b, 0, qi, 0))

    q_hd, k_hd, v_hd = pl.pallas_call(
        functools.partial(qkv_kernel, n_head=n_head),
        out_shape=(qkv_shape, qkv_shape, qkv_shape),
        grid_spec=pltpu.PrefetchScalarGridSpec(
            num_scalar_prefetch=0,
            grid=(B, nq),
            in_specs=[pl.BlockSpec((None, tq, C), lambda b, qi: (b, qi, 0))]
                     + [_full_spec(a) for a in stage1_params],
            out_specs=[qkv_out_spec, qkv_out_spec, qkv_out_spec],
        ),
        compiler_params=cparams,
    )(x, *stage1_params)

    # --------------------------- stage 2 call ---------------------------
    stage2_params = [w_aproj3, params["b_aproj"],
                     params["ln2_g"], params["ln2_b"],
                     w_fc, params["b_fc"], w_mproj, params["b_mproj"]]

    out = pl.pallas_call(
        attn_mlp_kernel,
        out_shape=jax.ShapeDtypeStruct((B, T, C), x.dtype),
        grid_spec=pltpu.PrefetchScalarGridSpec(
            num_scalar_prefetch=0,
            grid=(B, nq),
            in_specs=[pl.BlockSpec((None, tq, C), lambda b, qi: (b, qi, 0)),
                      pl.BlockSpec((None, n_head, tq, hd), lambda b, qi: (b, 0, qi, 0)),
                      pl.BlockSpec((None, n_head, T, hd), lambda b, qi: (b, 0, 0, 0)),
                      pl.BlockSpec((None, n_head, T, hd), lambda b, qi: (b, 0, 0, 0))]
                     + [_full_spec(a) for a in stage2_params],
            out_specs=pl.BlockSpec((None, tq, C), lambda b, qi: (b, qi, 0)),
        ),
        compiler_params=cparams,
    )(x, q_hd, k_hd, v_hd, *stage2_params)

    return out


# ------------------------- pure-JAX reference -------------------------

def gpt2_block_ref(x, params, n_head):
    B, T, C = x.shape
    hd = C // n_head

    def ln(h, g, b):
        mu = jnp.mean(h, axis=-1, keepdims=True)
        var = jnp.mean((h - mu) ** 2, axis=-1, keepdims=True)
        return (h - mu) * jax.lax.rsqrt(var + 1e-5) * g + b

    h = ln(x, params["ln1_g"], params["ln1_b"])
    qkv = h @ params["w_attn"] + params["b_attn"]
    q, k, v = jnp.split(qkv, 3, axis=-1)
    q = q.reshape(B, T, n_head, hd).transpose(0, 2, 1, 3)
    k = k.reshape(B, T, n_head, hd).transpose(0, 2, 1, 3)
    v = v.reshape(B, T, n_head, hd).transpose(0, 2, 1, 3)
    att = (q @ jnp.swapaxes(k, -2, -1)) / math.sqrt(hd)
    mask = jnp.tril(jnp.ones((T, T), bool))
    att = jnp.where(mask, att, -jnp.inf)
    att = jax.nn.softmax(att, axis=-1)
    y = (att @ v).transpose(0, 2, 1, 3).reshape(B, T, C)
    y = y @ params["w_aproj"] + params["b_aproj"]
    x = x + y

    h2 = ln(x, params["ln2_g"], params["ln2_b"])
    f = h2 @ params["w_fc"] + params["b_fc"]
    c = math.sqrt(2.0 / math.pi)
    f = 0.5 * f * (1.0 + jnp.tanh(c * (f + 0.044715 * f ** 3)))
    m = f @ params["w_mproj"] + params["b_mproj"]
    return x + m


# --------------------------------- main ---------------------------------

if __name__ == "__main__":
    # Small GPT-2 config: n_embd=32, n_head=4, block_size=8
    B, T, C, n_head = 2, 8, 32, 4
    keys = jax.random.split(jax.random.PRNGKey(0), 9)

    params = {
        # LayerNorms (PyTorch default init: weight=1, bias=0)
        "ln1_g": jnp.ones((1, C), jnp.float32),
        "ln1_b": jnp.zeros((1, C), jnp.float32),
        "ln2_g": jnp.ones((1, C), jnp.float32),
        "ln2_b": jnp.zeros((1, C), jnp.float32),
        # c_attn: Linear(C, 3C)    (stored as (in, out))
        "w_attn": 0.02 * jax.random.normal(keys[0], (C, 3 * C), jnp.float32),
        "b_attn": 0.02 * jax.random.normal(keys[1], (1, 3 * C), jnp.float32),
        # attn c_proj: Linear(C, C)
        "w_aproj": 0.02 * jax.random.normal(keys[2], (C, C), jnp.float32),
        "b_aproj": 0.02 * jax.random.normal(keys[3], (1, C), jnp.float32),
        # mlp c_fc: Linear(C, 4C)
        "w_fc": 0.02 * jax.random.normal(keys[4], (C, 4 * C), jnp.float32),
        "b_fc": 0.02 * jax.random.normal(keys[5], (1, 4 * C), jnp.float32),
        # mlp c_proj: Linear(4C, C)
        "w_mproj": 0.02 * jax.random.normal(keys[6], (4 * C, C), jnp.float32),
        "b_mproj": 0.02 * jax.random.normal(keys[7], (1, C), jnp.float32),
    }

    x = jax.random.normal(keys[8], (B, T, C), jnp.float32)

    out = jax.block_until_ready(gpt2_block(x, params, n_head))
    ref = jax.block_until_ready(gpt2_block_ref(x, params, n_head))

    # bf16 matmul operands + approx reciprocal => relaxed tolerance vs f32 reference.
    np.testing.assert_allclose(np.asarray(out), np.asarray(ref),
                               rtol=2e-2, atol=2e-2)
    print("KERNEL_OK")
</pallas_src>

<mosaic_0001>
module attributes {stable_mosaic.version = 11 : i64} {
  func.func @qkv_kernel(%arg0: i32, %arg1: i32, %arg2: memref<1x8x32xf32, #tpu.memory_space<vmem>>, %arg3: memref<1x32xf32, #tpu.memory_space<vmem>>, %arg4: memref<1x32xf32, #tpu.memory_space<vmem>>, %arg5: memref<32x96xbf16, #tpu.memory_space<vmem>>, %arg6: memref<1x96xf32, #tpu.memory_space<vmem>>, %arg7: memref<1x4x8x8xbf16, #tpu.memory_space<vmem>>, %arg8: memref<1x4x8x8xbf16, #tpu.memory_space<vmem>>, %arg9: memref<1x4x8x8xbf16, #tpu.memory_space<vmem>>) attributes {dimension_semantics = [#tpu.dimension_semantics<parallel>, #tpu.dimension_semantics<parallel>], iteration_bounds = array<i64: 2, 1>, scalar_prefetch = 0 : i64, scratch_operands = 0 : i64, tpu.core_type = #tpu.core_type<tc>, window_params = [{transform_indices = @transform_0, window_bounds = array<i64: 1, 8, 32>}, {pipeline_mode = #tpu.pipeline_mode<synchronous>, transform_indices = @transform_1, window_bounds = array<i64: 1, 32>}, {pipeline_mode = #tpu.pipeline_mode<synchronous>, transform_indices = @transform_2, window_bounds = array<i64: 1, 32>}, {pipeline_mode = #tpu.pipeline_mode<synchronous>, transform_indices = @transform_3, window_bounds = array<i64: 32, 96>}, {pipeline_mode = #tpu.pipeline_mode<synchronous>, transform_indices = @transform_4, window_bounds = array<i64: 1, 96>}, {transform_indices = @transform_5, window_bounds = array<i64: 1, 4, 8, 8>}, {transform_indices = @transform_6, window_bounds = array<i64: 1, 4, 8, 8>}, {transform_indices = @transform_7, window_bounds = array<i64: 1, 4, 8, 8>}]} {
    %c0 = arith.constant 0 : index
    %c0_0 = arith.constant 0 : index
    %c0_1 = arith.constant 0 : index
    %0 = vector.load %arg2[%c0, %c0_0, %c0_1] : memref<1x8x32xf32, #tpu.memory_space<vmem>>, vector<1x8x32xf32>
    %1 = vector.shape_cast %0 : vector<1x8x32xf32> to vector<8x32xf32>
    %c0_2 = arith.constant 0 : index
    %c0_3 = arith.constant 0 : index
    %2 = vector.load %arg3[%c0_2, %c0_3] : memref<1x32xf32, #tpu.memory_space<vmem>>, vector<1x32xf32>
    %c0_4 = arith.constant 0 : index
    %c0_5 = arith.constant 0 : index
    %3 = vector.load %arg4[%c0_4, %c0_5] : memref<1x32xf32, #tpu.memory_space<vmem>>, vector<1x32xf32>
    %cst = arith.constant dense<0.000000e+00> : vector<8xf32>
    %4 = vector.multi_reduction <add>, %1, %cst [1] : vector<8x32xf32> to vector<8xf32>
    %5 = vector.shape_cast %4 : vector<8xf32> to vector<8x1xf32>
    %cst_6 = arith.constant 3.200000e+01 : f32
    %6 = vector.broadcast %cst_6 : f32 to vector<8x1xf32>
    %7 = arith.divf %5, %6 : vector<8x1xf32>
    %8 = vector.broadcast %7 : vector<8x1xf32> to vector<8x32xf32>
    %9 = arith.subf %1, %8 : vector<8x32xf32>
    %10 = arith.mulf %9, %9 : vector<8x32xf32>
    %cst_7 = arith.constant dense<0.000000e+00> : vector<8xf32>
    %11 = vector.multi_reduction <add>, %10, %cst_7 [1] : vector<8x32xf32> to vector<8xf32>
    %12 = vector.shape_cast %11 : vector<8xf32> to vector<8x1xf32>
    %cst_8 = arith.constant 3.200000e+01 : f32
    %13 = vector.broadcast %cst_8 : f32 to vector<8x1xf32>
    %14 = arith.divf %12, %13 : vector<8x1xf32>
    %15 = vector.broadcast %7 : vector<8x1xf32> to vector<8x32xf32>
    %16 = arith.subf %1, %15 : vector<8x32xf32>
    %cst_9 = arith.constant 9.99999974E-6 : f32
    %17 = vector.broadcast %cst_9 : f32 to vector<8x1xf32>
    %18 = arith.addf %14, %17 : vector<8x1xf32>
    %19 = math.rsqrt %18 : vector<8x1xf32>
    %20 = vector.broadcast %19 : vector<8x1xf32> to vector<8x32xf32>
    %21 = arith.mulf %16, %20 : vector<8x32xf32>
    %22 = vector.broadcast %2 : vector<1x32xf32> to vector<8x32xf32>
    %23 = arith.mulf %21, %22 : vector<8x32xf32>
    %24 = vector.broadcast %3 : vector<1x32xf32> to vector<8x32xf32>
    %25 = arith.addf %23, %24 : vector<8x32xf32>
    %26 = arith.truncf %25 : vector<8x32xf32> to vector<8x32xbf16>
    %c0_10 = arith.constant 0 : index
    %c0_11 = arith.constant 0 : index
    %27 = vector.load %arg5[%c0_10, %c0_11] : memref<32x96xbf16, #tpu.memory_space<vmem>>, vector<32x96xbf16>
    %cst_12 = arith.constant dense<0.000000e+00> : vector<8x96xf32>
    %28 = tpu.matmul %26, %27, %cst_12 {dimension_numbers = #tpu.dot_dimension_numbers<[1], [0], [0], [1], [0, 0, 1, 1], [], []>} : vector<8x32xbf16>, vector<32x96xbf16>, vector<8x96xf32> -> vector<8x96xf32>
    %c0_13 = arith.constant 0 : index
    %c0_14 = arith.constant 0 : index
    %29 = vector.load %arg6[%c0_13, %c0_14] : memref<1x96xf32, #tpu.memory_space<vmem>>, vector<1x96xf32>
    %30 = vector.broadcast %29 : vector<1x96xf32> to vector<8x96xf32>
    %31 = arith.addf %28, %30 : vector<8x96xf32>
    %32 = vector.extract_strided_slice %31 {offsets = [0, 0], sizes = [8, 8], strides = [1, 1]} : vector<8x96xf32> to vector<8x8xf32>
    %33 = arith.truncf %32 : vector<8x8xf32> to vector<8x8xbf16>
    %c0_15 = arith.constant 0 : index
    %c0_16 = arith.constant 0 : index
    %c0_17 = arith.constant 0 : index
    %c0_18 = arith.constant 0 : index
    %34 = vector.load %arg7[%c0_15, %c0_16, %c0_17, %c0_18] : memref<1x4x8x8xbf16, #tpu.memory_space<vmem>>, vector<1x1x8x8xbf16>
    %35 = vector.shape_cast %34 : vector<1x1x8x8xbf16> to vector<8x8xbf16>
    %36 = vector.shape_cast %33 : vector<8x8xbf16> to vector<1x1x8x8xbf16>
    tpu.vector_store %arg7[%c0_15, %c0_16, %c0_17, %c0_18], %36 {strides = array<i32>} : memref<1x4x8x8xbf16, #tpu.memory_space<vmem>>, vector<1x1x8x8xbf16>,
    %37 = vector.extract_strided_slice %31 {offsets = [0, 32], sizes = [8, 8], strides = [1, 1]} : vector<8x96xf32> to vector<8x8xf32>
    %38 = arith.truncf %37 : vector<8x8xf32> to vector<8x8xbf16>
    %c0_19 = arith.constant 0 : index
    %c0_20 = arith.constant 0 : index
    %c0_21 = arith.constant 0 : index
    %c0_22 = arith.constant 0 : index
    %39 = vector.load %arg8[%c0_19, %c0_20, %c0_21, %c0_22] : memref<1x4x8x8xbf16, #tpu.memory_space<vmem>>, vector<1x1x8x8xbf16>
    %40 = vector.shape_cast %39 : vector<1x1x8x8xbf16> to vector<8x8xbf16>
    %41 = vector.shape_cast %38 : vector<8x8xbf16> to vector<1x1x8x8xbf16>
    tpu.vector_store %arg8[%c0_19, %c0_20, %c0_21, %c0_22], %41 {strides = array<i32>} : memref<1x4x8x8xbf16, #tpu.memory_space<vmem>>, vector<1x1x8x8xbf16>,
    %42 = vector.extract_strided_slice %31 {offsets = [0, 64], sizes = [8, 8], strides = [1, 1]} : vector<8x96xf32> to vector<8x8xf32>
    %43 = arith.truncf %42 : vector<8x8xf32> to vector<8x8xbf16>
    %c0_23 = arith.constant 0 : index
    %c0_24 = arith.constant 0 : index
    %c0_25 = arith.constant 0 : index
    %c0_26 = arith.constant 0 : index
    %44 = vector.load %arg9[%c0_23, %c0_24, %c0_25, %c0_26] : memref<1x4x8x8xbf16, #tpu.memory_space<vmem>>, vector<1x1x8x8xbf16>
    %45 = vector.shape_cast %44 : vector<1x1x8x8xbf16> to vector<8x8xbf16>
    %46 = vector.shape_cast %43 : vector<8x8xbf16> to vector<1x1x8x8xbf16>
    tpu.vector_store %arg9[%c0_23, %c0_24, %c0_25, %c0_26], %46 {strides = array<i32>} : memref<1x4x8x8xbf16, #tpu.memory_space<vmem>>, vector<1x1x8x8xbf16>,
    %47 = vector.extract_strided_slice %31 {offsets = [0, 8], sizes = [8, 8], strides = [1, 1]} : vector<8x96xf32> to vector<8x8xf32>
    %48 = arith.truncf %47 : vector<8x8xf32> to vector<8x8xbf16>
    %c0_27 = arith.constant 0 : index
    %c1 = arith.constant 1 : index
    %c0_28 = arith.constant 0 : index
    %c0_29 = arith.constant 0 : index
    %49 = vector.load %arg7[%c0_27, %c1, %c0_28, %c0_29] : memref<1x4x8x8xbf16, #tpu.memory_space<vmem>>, vector<1x1x8x8xbf16>
    %50 = vector.shape_cast %49 : vector<1x1x8x8xbf16> to vector<8x8xbf16>
    %51 = vector.shape_cast %48 : vector<8x8xbf16> to vector<1x1x8x8xbf16>
    tpu.vector_store %arg7[%c0_27, %c1, %c0_28, %c0_29], %51 {strides = array<i32>} : memref<1x4x8x8xbf16, #tpu.memory_space<vmem>>, vector<1x1x8x8xbf16>,
    %52 = vector.extract_strided_slice %31 {offsets = [0, 40], sizes = [8, 8], strides = [1, 1]} : vector<8x96xf32> to vector<8x8xf32>
    %53 = arith.truncf %52 : vector<8x8xf32> to vector<8x8xbf16>
    %c0_30 = arith.constant 0 : index
    %c1_31 = arith.constant 1 : index
    %c0_32 = arith.constant 0 : index
    %c0_33 = arith.constant 0 : index
    %54 = vector.load %arg8[%c0_30, %c1_31, %c0_32, %c0_33] : memref<1x4x8x8xbf16, #tpu.memory_space<vmem>>, vector<1x1x8x8xbf16>
    %55 = vector.shape_cast %54 : vector<1x1x8x8xbf16> to vector<8x8xbf16>
    %56 = vector.shape_cast %53 : vector<8x8xbf16> to vector<1x1x8x8xbf16>
    tpu.vector_store %arg8[%c0_30, %c1_31, %c0_32, %c0_33], %56 {strides = array<i32>} : memref<1x4x8x8xbf16, #tpu.memory_space<vmem>>, vector<1x1x8x8xbf16>,
    %57 = vector.extract_strided_slice %31 {offsets = [0, 72], sizes = [8, 8], strides = [1, 1]} : vector<8x96xf32> to vector<8x8xf32>
    %58 = arith.truncf %57 : vector<8x8xf32> to vector<8x8xbf16>
    %c0_34 = arith.constant 0 : index
    %c1_35 = arith.constant 1 : index
    %c0_36 = arith.constant 0 : index
    %c0_37 = arith.constant 0 : index
    %59 = vector.load %arg9[%c0_34, %c1_35, %c0_36, %c0_37] : memref<1x4x8x8xbf16, #tpu.memory_space<vmem>>, vector<1x1x8x8xbf16>
    %60 = vector.shape_cast %59 : vector<1x1x8x8xbf16> to vector<8x8xbf16>
    %61 = vector.shape_cast %58 : vector<8x8xbf16> to vector<1x1x8x8xbf16>
    tpu.vector_store %arg9[%c0_34, %c1_35, %c0_36, %c0_37], %61 {strides = array<i32>} : memref<1x4x8x8xbf16, #tpu.memory_space<vmem>>, vector<1x1x8x8xbf16>,
    %62 = vector.extract_strided_slice %31 {offsets = [0, 16], sizes = [8, 8], strides = [1, 1]} : vector<8x96xf32> to vector<8x8xf32>
    %63 = arith.truncf %62 : vector<8x8xf32> to vector<8x8xbf16>
    %c0_38 = arith.constant 0 : index
    %c2 = arith.constant 2 : index
    %c0_39 = arith.constant 0 : index
    %c0_40 = arith.constant 0 : index
    %64 = vector.load %arg7[%c0_38, %c2, %c0_39, %c0_40] : memref<1x4x8x8xbf16, #tpu.memory_space<vmem>>, vector<1x1x8x8xbf16>
    %65 = vector.shape_cast %64 : vector<1x1x8x8xbf16> to vector<8x8xbf16>
    %66 = vector.shape_cast %63 : vector<8x8xbf16> to vector<1x1x8x8xbf16>
    tpu.vector_store %arg7[%c0_38, %c2, %c0_39, %c0_40], %66 {strides = array<i32>} : memref<1x4x8x8xbf16, #tpu.memory_space<vmem>>, vector<1x1x8x8xbf16>,
    %67 = vector.extract_strided_slice %31 {offsets = [0, 48], sizes = [8, 8], strides = [1, 1]} : vector<8x96xf32> to vector<8x8xf32>
    %68 = arith.truncf %67 : vector<8x8xf32> to vector<8x8xbf16>
    %c0_41 = arith.constant 0 : index
    %c2_42 = arith.constant 2 : index
    %c0_43 = arith.constant 0 : index
    %c0_44 = arith.constant 0 : index
    %69 = vector.load %arg8[%c0_41, %c2_42, %c0_43, %c0_44] : memref<1x4x8x8xbf16, #tpu.memory_space<vmem>>, vector<1x1x8x8xbf16>
    %70 = vector.shape_cast %69 : vector<1x1x8x8xbf16> to vector<8x8xbf16>
    %71 = vector.shape_cast %68 : vector<8x8xbf16> to vector<1x1x8x8xbf16>
    tpu.vector_store %arg8[%c0_41, %c2_42, %c0_43, %c0_44], %71 {strides = array<i32>} : memref<1x4x8x8xbf16, #tpu.memory_space<vmem>>, vector<1x1x8x8xbf16>,
    %72 = vector.extract_strided_slice %31 {offsets = [0, 80], sizes = [8, 8], strides = [1, 1]} : vector<8x96xf32> to vector<8x8xf32>
    %73 = arith.truncf %72 : vector<8x8xf32> to vector<8x8xbf16>
    %c0_45 = arith.constant 0 : index
    %c2_46 = arith.constant 2 : index
    %c0_47 = arith.constant 0 : index
    %c0_48 = arith.constant 0 : index
    %74 = vector.load %arg9[%c0_45, %c2_46, %c0_47, %c0_48] : memref<1x4x8x8xbf16, #tpu.memory_space<vmem>>, vector<1x1x8x8xbf16>
    %75 = vector.shape_cast %74 : vector<1x1x8x8xbf16> to vector<8x8xbf16>
    %76 = vector.shape_cast %73 : vector<8x8xbf16> to vector<1x1x8x8xbf16>
    tpu.vector_store %arg9[%c0_45, %c2_46, %c0_47, %c0_48], %76 {strides = array<i32>} : memref<1x4x8x8xbf16, #tpu.memory_space<vmem>>, vector<1x1x8x8xbf16>,
    %77 = vector.extract_strided_slice %31 {offsets = [0, 24], sizes = [8, 8], strides = [1, 1]} : vector<8x96xf32> to vector<8x8xf32>
    %78 = arith.truncf %77 : vector<8x8xf32> to vector<8x8xbf16>
    %c0_49 = arith.constant 0 : index
    %c3 = arith.constant 3 : index
    %c0_50 = arith.constant 0 : index
    %c0_51 = arith.constant 0 : index
    %79 = vector.load %arg7[%c0_49, %c3, %c0_50, %c0_51] : memref<1x4x8x8xbf16, #tpu.memory_space<vmem>>, vector<1x1x8x8xbf16>
    %80 = vector.shape_cast %79 : vector<1x1x8x8xbf16> to vector<8x8xbf16>
    %81 = vector.shape_cast %78 : vector<8x8xbf16> to vector<1x1x8x8xbf16>
    tpu.vector_store %arg7[%c0_49, %c3, %c0_50, %c0_51], %81 {strides = array<i32>} : memref<1x4x8x8xbf16, #tpu.memory_space<vmem>>, vector<1x1x8x8xbf16>,
    %82 = vector.extract_strided_slice %31 {offsets = [0, 56], sizes = [8, 8], strides = [1, 1]} : vector<8x96xf32> to vector<8x8xf32>
    %83 = arith.truncf %82 : vector<8x8xf32> to vector<8x8xbf16>
    %c0_52 = arith.constant 0 : index
    %c3_53 = arith.constant 3 : index
    %c0_54 = arith.constant 0 : index
    %c0_55 = arith.constant 0 : index
    %84 = vector.load %arg8[%c0_52, %c3_53, %c0_54, %c0_55] : memref<1x4x8x8xbf16, #tpu.memory_space<vmem>>, vector<1x1x8x8xbf16>
    %85 = vector.shape_cast %84 : vector<1x1x8x8xbf16> to vector<8x8xbf16>
    %86 = vector.shape_cast %83 : vector<8x8xbf16> to vector<1x1x8x8xbf16>
    tpu.vector_store %arg8[%c0_52, %c3_53, %c0_54, %c0_55], %86 {strides = array<i32>} : memref<1x4x8x8xbf16, #tpu.memory_space<vmem>>, vector<1x1x8x8xbf16>,
    %87 = vector.extract_strided_slice %31 {offsets = [0, 88], sizes = [8, 8], strides = [1, 1]} : vector<8x96xf32> to vector<8x8xf32>
    %88 = arith.truncf %87 : vector<8x8xf32> to vector<8x8xbf16>
    %c0_56 = arith.constant 0 : index
    %c3_57 = arith.constant 3 : index
    %c0_58 = arith.constant 0 : index
    %c0_59 = arith.constant 0 : index
    %89 = vector.load %arg9[%c0_56, %c3_57, %c0_58, %c0_59] : memref<1x4x8x8xbf16, #tpu.memory_space<vmem>>, vector<1x1x8x8xbf16>
    %90 = vector.shape_cast %89 : vector<1x1x8x8xbf16> to vector<8x8xbf16>
    %91 = vector.shape_cast %88 : vector<8x8xbf16> to vector<1x1x8x8xbf16>
    tpu.vector_store %arg9[%c0_56, %c3_57, %c0_58, %c0_59], %91 {strides = array<i32>} : memref<1x4x8x8xbf16, #tpu.memory_space<vmem>>, vector<1x1x8x8xbf16>,
    return
  }
  func.func @transform_0(%arg0: i32, %arg1: i32) -> (i32, i32, i32) {
    %c0_i32 = arith.constant 0 : i32
    %c0_i32_0 = arith.constant 0 : i32
    return %arg0, %arg1, %c0_i32 : i32, i32, i32
  }
  func.func @transform_1(%arg0: i32, %arg1: i32) -> (i32, i32) {
    %c0_i32 = arith.constant 0 : i32
    %c0_i32_0 = arith.constant 0 : i32
    %c0_i32_1 = arith.constant 0 : i32
    return %c0_i32, %c0_i32_0 : i32, i32
  }
  func.func @transform_2(%arg0: i32, %arg1: i32) -> (i32, i32) {
    %c0_i32 = arith.constant 0 : i32
    %c0_i32_0 = arith.constant 0 : i32
    %c0_i32_1 = arith.constant 0 : i32
    return %c0_i32, %c0_i32_0 : i32, i32
  }
  func.func @transform_3(%arg0: i32, %arg1: i32) -> (i32, i32) {
    %c0_i32 = arith.constant 0 : i32
    %c0_i32_0 = arith.constant 0 : i32
    %c0_i32_1 = arith.constant 0 : i32
    return %c0_i32, %c0_i32_0 : i32, i32
  }
  func.func @transform_4(%arg0: i32, %arg1: i32) -> (i32, i32) {
    %c0_i32 = arith.constant 0 : i32
    %c0_i32_0 = arith.constant 0 : i32
    %c0_i32_1 = arith.constant 0 : i32
    return %c0_i32, %c0_i32_0 : i32, i32
  }
  func.func @transform_5(%arg0: i32, %arg1: i32) -> (i32, i32, i32, i32) {
    %c0_i32 = arith.constant 0 : i32
    %c0_i32_0 = arith.constant 0 : i32
    %c0_i32_1 = arith.constant 0 : i32
    return %arg0, %c0_i32, %arg1, %c0_i32_0 : i32, i32, i32, i32
  }
  func.func @transform_6(%arg0: i32, %arg1: i32) -> (i32, i32, i32, i32) {
    %c0_i32 = arith.constant 0 : i32
    %c0_i32_0 = arith.constant 0 : i32
    %c0_i32_1 = arith.constant 0 : i32
    return %arg0, %c0_i32, %arg1, %c0_i32_0 : i32, i32, i32, i32
  }
  func.func @transform_7(%arg0: i32, %arg1: i32) -> (i32, i32, i32, i32) {
    %c0_i32 = arith.constant 0 : i32
    %c0_i32_0 = arith.constant 0 : i32
    %c0_i32_1 = arith.constant 0 : i32
    return %arg0, %c0_i32, %arg1, %c0_i32_0 : i32, i32, i32, i32
  }
}

</mosaic_0001>

<llo_original>
// kernel: tpu_custom_call.1
$region0: #{tpu_custom_call.1}
  #allocation0 [shape = 'u32[]', space=smem, size = 0x4, offset = 0x4, fixed_abs, tag = 'smem constant byte address 0x4 - core index']
  #allocation1 [shape = 'u32[72,128]{1,0:T(1,128)}', space=vmem, size = 0x9000, scoped, tag = 'internal scratch']
  %s0 = inlined_call_operand.hbm [shape: f32[2,8,32], index: 0, kind: input, shape index: {}]
  %s1 = inlined_call_operand.hbm [shape: f32[1,32], index: 1, kind: input, shape index: {}]
  %s2 = inlined_call_operand.vmem [shape: f32[1,32], index: 2, kind: input, shape index: {}]
  %s3 = inlined_call_operand.hbm [shape: bf16[32,96], index: 3, kind: input, shape index: {}]
  %s4 = inlined_call_operand.vmem [shape: f32[1,96], index: 4, kind: input, shape index: {}]
  %s5 = inlined_call_operand.hbm [shape: bf16[2,4,8,8], index: 5, kind: output, shape index: {0}]
  %s6 = inlined_call_operand.hbm [shape: bf16[2,4,8,8], index: 6, kind: output, shape index: {1}]
  %s7 = inlined_call_operand.hbm [shape: bf16[2,4,8,8], index: 7, kind: output, shape index: {2}]
  %8 = xla_tuple %s5, %s6, %s7
  %s9 = sld [smem:[#allocation0]]
  $region81: #{tpu_custom_call.1} parent=0
    _
  %s11 = ssub.s32 1, %s9
  %s12 = scalar_select 0, %s11, %s9
  $region1: #{tpu_custom_call.1} parent=0
    #allocation2 [shape = 'u8[8192]{0}', space=vmem, size = 0x2000, scoped, tag = 'input window, operand 0']
    #allocation3 [shape = 's32[2]{0}', space=sflag, size = 0x8, scoped, tag = 'scoped memory for tpu_custom_call.1']
    #allocation4 [shape = 's32[2]{0}', space=sflag, size = 0x8, scoped, tag = 'scoped memory for tpu_custom_call.1']
    #allocation5 [shape = 'u8[512]{0}', space=vmem, size = 0x400, scoped, tag = 'input window, operand 1, single buffered']
    #allocation6 [shape = 's32[1]{0}', space=sflag, size = 0x4, scoped, tag = 'scoped memory for tpu_custom_call.1']
    #allocation7 [shape = 'u8[8192]{0}', space=vmem, size = 0x2000, scoped, tag = 'input window, operand 3, single buffered']
    #allocation8 [shape = 'u8[16384]{0}', space=vmem, size = 0x4000, scoped, tag = 'output window, operand 0']
    #allocation9 [shape = 'u8[16384]{0}', space=vmem, size = 0x4000, scoped, tag = 'output window, operand 1']
    #allocation10 [shape = 's32[2]{0}', space=sflag, size = 0x8, scoped, tag = 'scoped memory for tpu_custom_call.1']
    #allocation11 [shape = 'u8[16384]{0}', space=vmem, size = 0x4000, scoped, tag = 'output window, operand 2']
    %13 = vsyncpa [#allocation3], 0
    %s14 = scalar_lea.sflag [#allocation3], 1
    %15 = vsyncpa %s14, 0
    %16 = vsyncpa [#allocation6], 0
    %17 = vsyncpa [#allocation4], 0
    %s18 = scalar_lea.sflag [#allocation4], 1
    %19 = vsyncpa %s18, 0
    %20 = vsyncpa [#allocation10], 0
    %s21 = scalar_lea.sflag [#allocation10], 1
    %22 = vsyncpa %s21, 0
    loop: start=0, step=1, limit=4
    $region2: #{tpu_custom_call.1} parent=1 // loop_pre_header
      _
    $region3: #{tpu_custom_call.1} parent=1 // loop_header
      %s24 = sphi 0, %s28
      %p25 = scmp.ge.s32.totalorder %s24, 4
      %s31 = sphi 0, %s43
      %s32 = sphi 0, %s39
      %s33 = sphi 0, %s31
      %s34 = sphi 0, %s32
      %s35 = sphi 0, %s33
      %s36 = sphi 0, %s34
      %s48 = sphi 0, %s50
      %s51 = sphi 0, %s48
      %s52 = sphi 0, %s51
      %s68 = sphi 0, %s52
      %s72 = sphi 0, %s72
      %s74 = sphi 0, %s72
      %s75 = sphi 0, %s74
      %s89 = sphi 0, %s75
      %s93 = sphi 0, %s93
      %s95 = sphi 0, %s93
      %s96 = sphi 0, %s95
      %s110 = sphi 0, %s96
      %s114 = sphi 0, %s114
      %s116 = sphi 0, %s114
      %s117 = sphi 0, %s116
      %s131 = sphi 0, %s117
      %s135 = sphi 0, %s135
      %s137 = sphi 0, %s135
      %s138 = sphi 0, %s137
      %s152 = sphi 0, %s138
      %s160 = sphi 0, %s162
      %s163 = sphi 0, %s160
      %s164 = sphi 0, %s163
      %s180 = sphi 0, %s164
      %s188 = sphi 0, %s190
      %s191 = sphi 0, %s188
      %s192 = sphi 0, %s191
      %s208 = sphi 0, %s192
      %s216 = sphi 0, %s218
      %s219 = sphi 0, %s216
      %s220 = sphi 0, %s219
      %s236 = sphi 0, %s220
    $region4: #{tpu_custom_call.1} parent=1 // loop_header_branch
      %27 = sbr.rel (%p25) target = $region8
    $region5: #{tpu_custom_call.1} parent=1 // loop_body
      %s29 = ssub.s32 %s24, 1
      %s30 = ssub.s32 %s24, 2
      %s37 = sadd.s32 1, %s32
      %p38 = scmp.ge.s32.totalorder %s37, 1
      %s39 = scalar_select %p38, 0, %s37
      %s40 = sadd.s32 1, %s31
      %s41 = scalar_select %p38, %s40, %s31
      %p42 = scmp.ge.s32.totalorder %s41, 2
      %s43 = scalar_select %p42, 0, %s41
      %s44 = ssub.s32 %s31, %s43
      %s45 = ssub.s32 %s32, %s39
      %s46 = sor.u32 %s44, %s45
      %p47 = scmp.eq.s32.totalorder %s46, 0
      %s49 = sadd.s32 %s48, 1
      %s50 = scalar_select %p47, %s48, %s49
      %p53 = pneg %p47
      %p54 = scmp.eq.s32.totalorder %s24, 1
      %p55 = por %p53, %p54
      %p56 = scmp.ne.s32.totalorder %s48, %s51
      %p57 = scmp.eq.s32.totalorder %s24, 0
      %p58 = por %p56, %p57
      %p59 = scmp.ne.s32.totalorder %s48, %s51
      %p60 = scmp.eq.s32.totalorder %s29, 1
      %p61 = por %p59, %p60
      %p62 = scmp.ne.s32.totalorder %s51, %s52
      %p63 = scmp.eq.s32.totalorder %s29, 0
      %p64 = por %p62, %p63
      %p65 = scmp.ne.s32.totalorder %s51, %s52
      %p66 = scmp.eq.s32.totalorder %s30, 1
      %p67 = por %p65, %p66
      %p69 = scmp.ne.s32.totalorder %s52, %s68
      %p70 = scmp.eq.s32.totalorder %s30, 0
      %p71 = por %p69, %p70
      %s73 = sadd.s32 %s72, 1
      %p76 = scmp.eq.s32.totalorder %s24, 1
      %p77 = scmp.ne.s32.totalorder %s72, %s74
      %p78 = scmp.eq.s32.totalorder %s24, 0
      %p79 = por %p77, %p78
      %p80 = scmp.ne.s32.totalorder %s72, %s74
      %p81 = scmp.eq.s32.totalorder %s29, 1
      %p82 = por %p80, %p81
      %p83 = scmp.ne.s32.totalorder %s74, %s75
      %p84 = scmp.eq.s32.totalorder %s29, 0
      %p85 = por %p83, %p84
      %p86 = scmp.ne.s32.totalorder %s74, %s75
      %p87 = scmp.eq.s32.totalorder %s30, 1
      %p88 = por %p86, %p87
      %p90 = scmp.ne.s32.totalorder %s75, %s89
      %p91 = scmp.eq.s32.totalorder %s30, 0
      %p92 = por %p90, %p91
      %s94 = sadd.s32 %s93, 1
      %p97 = scmp.eq.s32.totalorder %s24, 1
      %p98 = scmp.ne.s32.totalorder %s93, %s95
      %p99 = scmp.eq.s32.totalorder %s24, 0
      %p100 = por %p98, %p99
      %p101 = scmp.ne.s32.totalorder %s93, %s95
      %p102 = scmp.eq.s32.totalorder %s29, 1
      %p103 = por %p101, %p102
      %p104 = scmp.ne.s32.totalorder %s95, %s96
      %p105 = scmp.eq.s32.totalorder %s29, 0
      %p106 = por %p104, %p105
      %p107 = scmp.ne.s32.totalorder %s95, %s96
      %p108 = scmp.eq.s32.totalorder %s30, 1
      %p109 = por %p107, %p108
      %p111 = scmp.ne.s32.totalorder %s96, %s110
      %p112 = scmp.eq.s32.totalorder %s30, 0
      %p113 = por %p111, %p112
      %s115 = sadd.s32 %s114, 1
      %p118 = scmp.eq.s32.totalorder %s24, 1
      %p119 = scmp.ne.s32.totalorder %s114, %s116
      %p120 = scmp.eq.s32.totalorder %s24, 0
      %p121 = por %p119, %p120
      %p122 = scmp.ne.s32.totalorder %s114, %s116
      %p123 = scmp.eq.s32.totalorder %s29, 1
      %p124 = por %p122, %p123
      %p125 = scmp.ne.s32.totalorder %s116, %s117
      %p126 = scmp.eq.s32.totalorder %s29, 0
      %p127 = por %p125, %p126
      %p128 = scmp.ne.s32.totalorder %s116, %s117
      %p129 = scmp.eq.s32.totalorder %s30, 1
      %p130 = por %p128, %p129
      %p132 = scmp.ne.s32.totalorder %s117, %s131
      %p133 = scmp.eq.s32.totalorder %s30, 0
      %p134 = por %p132, %p133
      %s136 = sadd.s32 %s135, 1
      %p139 = scmp.eq.s32.totalorder %s24, 1
      %p140 = scmp.ne.s32.totalorder %s135, %s137
      %p141 = scmp.eq.s32.totalorder %s24, 0
      %p142 = por %p140, %p141
      %p143 = scmp.ne.s32.totalorder %s135, %s137
      %p144 = scmp.eq.s32.totalorder %s29, 1
      %p145 = por %p143, %p144
      %p146 = scmp.ne.s32.totalorder %s137, %s138
      %p147 = scmp.eq.s32.totalorder %s29, 0
      %p148 = por %p146, %p147
      %p149 = scmp.ne.s32.totalorder %s137, %s138
      %p150 = scmp.eq.s32.totalorder %s30, 1
      %p151 = por %p149, %p150
      %p153 = scmp.ne.s32.totalorder %s138, %s152
      %p154 = scmp.eq.s32.totalorder %s30, 0
      %p155 = por %p153, %p154
      %s156 = ssub.s32 %s31, %s43
      %s157 = ssub.s32 %s32, %s39
      %s158 = sor.u32 %s156, %s157
      %p159 = scmp.eq.s32.totalorder %s158, 0
      %s161 = sadd.s32 %s160, 1
      %s162 = scalar_select %p159, %s160, %s161
      %p165 = pneg %p159
      %p166 = scmp.eq.s32.totalorder %s24, 1
      %p167 = por %p165, %p166
      %p168 = scmp.ne.s32.totalorder %s160, %s163
      %p169 = scmp.eq.s32.totalorder %s24, 0
      %p170 = por %p168, %p169
      %p171 = scmp.ne.s32.totalorder %s160, %s163
      %p172 = scmp.eq.s32.totalorder %s29, 1
      %p173 = por %p171, %p172
      %p174 = scmp.ne.s32.totalorder %s163, %s164
      %p175 = scmp.eq.s32.totalorder %s29, 0
      %p176 = por %p174, %p175
      %p177 = scmp.ne.s32.totalorder %s163, %s164
      %p178 = scmp.eq.s32.totalorder %s30, 1
      %p179 = por %p177, %p178
      %p181 = scmp.ne.s32.totalorder %s164, %s180
      %p182 = scmp.eq.s32.totalorder %s30, 0
      %p183 = por %p181, %p182
      %s184 = ssub.s32 %s31, %s43
      %s185 = ssub.s32 %s32, %s39
      %s186 = sor.u32 %s184, %s185
      %p187 = scmp.eq.s32.totalorder %s186, 0
      %s189 = sadd.s32 %s188, 1
      %s190 = scalar_select %p187, %s188, %s189
      %p193 = pneg %p187
      %p194 = scmp.eq.s32.totalorder %s24, 1
      %p195 = por %p193, %p194
      %p196 = scmp.ne.s32.totalorder %s188, %s191
      %p197 = scmp.eq.s32.totalorder %s24, 0
      %p198 = por %p196, %p197
      %p199 = scmp.ne.s32.totalorder %s188, %s191
      %p200 = scmp.eq.s32.totalorder %s29, 1
      %p201 = por %p199, %p200
      %p202 = scmp.ne.s32.totalorder %s191, %s192
      %p203 = scmp.eq.s32.totalorder %s29, 0
      %p204 = por %p202, %p203
      %p205 = scmp.ne.s32.totalorder %s191, %s192
      %p206 = scmp.eq.s32.totalorder %s30, 1
      %p207 = por %p205, %p206
      %p209 = scmp.ne.s32.totalorder %s192, %s208
      %p210 = scmp.eq.s32.totalorder %s30, 0
      %p211 = por %p209, %p210
      %s212 = ssub.s32 %s31, %s43
      %s213 = ssub.s32 %s32, %s39
      %s214 = sor.u32 %s212, %s213
      %p215 = scmp.eq.s32.totalorder %s214, 0
      %s217 = sadd.s32 %s216, 1
      %s218 = scalar_select %p215, %s216, %s217
      %p221 = pneg %p215
      %p222 = scmp.eq.s32.totalorder %s24, 1
      %p223 = por %p221, %p222
      %p224 = scmp.ne.s32.totalorder %s216, %s219
      %p225 = scmp.eq.s32.totalorder %s24, 0
      %p226 = por %p224, %p225
      %p227 = scmp.ne.s32.totalorder %s216, %s219
      %p228 = scmp.eq.s32.totalorder %s29, 1
      %p229 = por %p227, %p228
      %p230 = scmp.ne.s32.totalorder %s219, %s220
      %p231 = scmp.eq.s32.totalorder %s29, 0
      %p232 = por %p230, %p231
      %p233 = scmp.ne.s32.totalorder %s219, %s220
      %p234 = scmp.eq.s32.totalorder %s30, 1
      %p235 = por %p233, %p234
      %p237 = scmp.ne.s32.totalorder %s220, %s236
      %p238 = scmp.eq.s32.totalorder %s30, 0
      %p239 = por %p237, %p238
      %p240 = scmp.le.s32.totalorder 1, %s24
      %p241 = scmp.lt.s32.totalorder %s24, 3
      %p242 = pnand %p240, %p241
      %p243 = pneg %p242
      // Predicated region
      $region9: #{tpu_custom_call.1} parent=5 // pred_check
        _
      $region10: #{tpu_custom_call.1} parent=5 // pred_check_branch
        %245 = sbr.rel (%p242) target = $region12
      $region11: #{tpu_custom_call.1} parent=5 // pred_region
        %s246 = ssub.s32 %s24, 1
        // Predicated region
        $region13: #{tpu_custom_call.1} parent=11 // pred_check
          %p247 = pneg %p85
        $region14: #{tpu_custom_call.1} parent=11 // pred_check_branch
          %249 = sbr.rel (%p247) target = $region16
        $region15: #{tpu_custom_call.1} parent=11 // pred_region
          %251 = vsyncadd [#allocation6], 0
          %s253 = sshll.u32 %s1, 4
          %s254 = int_to_ptr.hbm [resolvable:$true] %s253
          %s255 = sshll.u32 [#allocation5], 4
          %s256 = int_to_ptr.vmem [resolvable:$true] %s255
          %258 = dma.hbm_to_vmem [thread:$0]  %s254, 16, %s256, [#allocation6]
        $region16: #{tpu_custom_call.1} parent=11 // pred_fallthru
          _
        // Predicated region
        $region17: #{tpu_custom_call.1} parent=11 // pred_check
          %p259 = pneg %p106
        $region18: #{tpu_custom_call.1} parent=11 // pred_check_branch
          %261 = sbr.rel (%p259) target = $region20
        $region19: #{tpu_custom_call.1} parent=11 // pred_region
          _
        $region20: #{tpu_custom_call.1} parent=11 // pred_fallthru
          _
        // Predicated region
        $region21: #{tpu_custom_call.1} parent=11 // pred_check
          %p262 = pneg %p127
        $region22: #{tpu_custom_call.1} parent=11 // pred_check_branch
          %264 = sbr.rel (%p262) target = $region24
        $region23: #{tpu_custom_call.1} parent=11 // pred_region
          %266 = vsyncadd [#allocation6], 0
          %s267 = sshll.u32 %s3, 4
          %s268 = int_to_ptr.hbm [resolvable:$true] %s267
          %s269 = sshll.u32 [#allocation7], 4
          %s270 = int_to_ptr.vmem [resolvable:$true] %s269
          %275 = dma.hbm_to_vmem [thread:$0]  %s268, 256, %s270, [#allocation6], 64, 64, 4
        $region24: #{tpu_custom_call.1} parent=11 // pred_fallthru
          _
        // Predicated region
        $region25: #{tpu_custom_call.1} parent=11 // pred_check
          %p276 = pneg %p148
        $region26: #{tpu_custom_call.1} parent=11 // pred_check_branch
          %278 = sbr.rel (%p276) target = $region28
        $region27: #{tpu_custom_call.1} parent=11 // pred_region
          _
        $region28: #{tpu_custom_call.1} parent=11 // pred_fallthru
          _
      $region12: #{tpu_custom_call.1} parent=5 // pred_fallthru
        _
      %p279 = scmp.lt.s32.totalorder %s24, 2
      // Predicated region
      $region29: #{tpu_custom_call.1} parent=5 // pred_check
        %p280 = pneg %p279
      $region30: #{tpu_custom_call.1} parent=5 // pred_check_branch
        %282 = sbr.rel (%p280) target = $region32
      $region31: #{tpu_custom_call.1} parent=5 // pred_region
        // Predicated region
        $region33: #{tpu_custom_call.1} parent=31 // pred_check
          %p283 = pneg %p58
        $region34: #{tpu_custom_call.1} parent=31 // pred_check_branch
          %285 = sbr.rel (%p283) target = $region36
        $region35: #{tpu_custom_call.1} parent=31 // pred_region
          %s286 = sand.u32 %s48, 1
          %s287 = scalar_lea.sflag [#allocation3], %s286
          %s288 = sand.u32 %s48, 1
          %s289 = smul.addr %s288, 8
          %s290 = scalar_lea.vmem [#allocation2], %s289
          %292 = vsyncadd %s287, 0
          %s293 = sadd.s32 %s32, %s31
          %s294 = smul.addr %s293, 8
          %s295 = scalar_lea.hbm %s0, %s294
          %s297 = sshll.u32 %s295, 4
          %s298 = int_to_ptr.hbm [resolvable:$true] %s297
          %s299 = sshll.u32 %s290, 4
          %s300 = int_to_ptr.vmem [resolvable:$true] %s299
          %302 = dma.hbm_to_vmem [thread:$0]  %s298, 128, %s300, %s287
        $region36: #{tpu_custom_call.1} parent=31 // pred_fallthru
          _
      $region32: #{tpu_custom_call.1} parent=5 // pred_fallthru
        _
      %p303 = scmp.le.s32.totalorder 1, %s24
      %p304 = scmp.lt.s32.totalorder %s24, 3
      %p305 = pnand %p303, %p304
      %p306 = pneg %p305
      // Predicated region
      $region37: #{tpu_custom_call.1} parent=5 // pred_check
        _
      $region38: #{tpu_custom_call.1} parent=5 // pred_check_branch
        %308 = sbr.rel (%p305) target = $region40
      $region39: #{tpu_custom_call.1} parent=5 // pred_region
        %s309 = ssub.s32 %s24, 1
        %s310 = sand.u32 %s51, 1
        %s311 = scalar_lea.sflag [#allocation3], %s310
        %s312 = sand.u32 %s51, 1
        %s313 = smul.addr %s312, 8
        %s314 = scalar_lea.vmem [#allocation2], %s313
        // Predicated region
        $region41: #{tpu_custom_call.1} parent=39 // pred_check
          %p315 = pneg %p64
        $region42: #{tpu_custom_call.1} parent=39 // pred_check_branch
          %317 = sbr.rel (%p315) target = $region44
        $region43: #{tpu_custom_call.1} parent=39 // pred_region
          %319 = dma.done %s311, 128
        $region44: #{tpu_custom_call.1} parent=39 // pred_fallthru
          _
        // Predicated region
        $region45: #{tpu_custom_call.1} parent=39 // pred_check
          %p320 = pneg %p85
        $region46: #{tpu_custom_call.1} parent=39 // pred_check_branch
          %322 = sbr.rel (%p320) target = $region48
        $region47: #{tpu_custom_call.1} parent=39 // pred_region
          %324 = dma.done [#allocation6], 16
        $region48: #{tpu_custom_call.1} parent=39 // pred_fallthru
          _
        // Predicated region
        $region49: #{tpu_custom_call.1} parent=39 // pred_check
          %p325 = pneg %p127
        $region50: #{tpu_custom_call.1} parent=39 // pred_check_branch
          %327 = sbr.rel (%p325) target = $region52
        $region51: #{tpu_custom_call.1} parent=39 // pred_region
          %329 = dma.done [#allocation6], 256
        $region52: #{tpu_custom_call.1} parent=39 // pred_fallthru
          _
        %s330 = sand.u32 %s51, 1
        %s331 = scalar_lea.sflag [#allocation3], %s330
        %s332 = sand.u32 %s51, 1
        %s333 = smul.addr %s332, 8
        %s334 = scalar_lea.vmem [#allocation2], %s333
        %p335 = pneg %p64
        %p336 = pneg %p61
        %p337 = pneg %p85
        %p338 = pneg %p82
        %p339 = pneg %p106
        %p340 = pneg %p103
        %p341 = pneg %p127
        %p342 = pneg %p124
        %p343 = pneg %p148
        %p344 = pneg %p145
        %p345 = pneg %p176
        %p346 = pneg %p173
        %s347 = sand.u32 %s163, 1
        %s348 = scalar_lea.sflag [#allocation4], %s347
        %s349 = sand.u32 %s163, 1
        %s350 = smul.addr %s349, 16
        %s351 = scalar_lea.vmem [#allocation8], %s350
        %p352 = pneg %p204
        %p353 = pneg %p201
        %s354 = sand.u32 %s29, 1
        %s355 = scalar_lea.sflag [#allocation10], %s354
        %s356 = sand.u32 %s191, 1
        %s357 = smul.addr %s356, 16
        %s358 = scalar_lea.vmem [#allocation9], %s357
        %p359 = pneg %p232
        %p360 = pneg %p229
        %s361 = sand.u32 %s29, 1
        %s362 = scalar_lea.sflag [#allocation10], %s361
        %s363 = sand.u32 %s219, 1
        %s364 = smul.addr %s363, 16
        %s365 = scalar_lea.vmem [#allocation11], %s364
        %v367 = vld [vmem:[%s314] sm:$0xff]
        %v368 = vld [vmem:[#allocation5] sm:$0x1]
        %v369 = vld [vmem:[%s2] sm:$0x1]
        %vm370 = vcmask 261120
        %v371 = vsel %vm370, %v367, 0.0
        %372 = vadd.xlane.f32.xlu0 %v371
        %v373 = vpop.xlane.xlu0 %372
        %v374 = vrcp.pop 32.0
        %v375 = vmul.f32 32.0, %v374
        %v376 = vsub.f32 1.0, %v375
        %v377 = vmul.f32 %v374, %v376
        %v378 = vadd.f32 %v374, %v377
        %vm379 = vweird.f32 %v374
        %v380 = vsel %vm379, %v374, %v378
        %v381 = vmul.f32 %v373, %v380
        %v382 = vsub.f32 %v367, %v381
        %v383 = vmul.f32 %v382, %v382
        %v384 = vsel %vm370, %v383, 0.0
        %385 = vadd.xlane.f32.xlu0 %v384
        %v386 = vpop.xlane.xlu0 %385
        %v387 = vmul.f32 %v386, %v380
        %v388 = vadd.f32 %v387, 1e-05
        %v389 = vrsqrt.pop %v388
        %v390 = vmul.f32 %v389, %v388
        %v391 = vmul.f32 %v390, %v389
        %v392 = vmul.f32 0.5, %v391
        %v393 = vsub.f32 1.5, %v392
        %v394 = vmul.f32 %v389, %v393
        %vm395 = vweird.f32 %v388
        %vm396 = vweird.f32 %v389
        %vm397 = vmor %vm395, %vm396
        %v398 = vsel %vm397, %v389, %v394
        %v399 = vmul.f32 %v382, %v398
        %v401 = vperm.slane %v368, 0
        %v403 = vmul.f32 %v399, %v401
        %v405 = vperm.slane %v369, 0
        %v407 = vadd.f32 %v403, %v405
        %v408 = vpack.c.bf16 %v407, %v407
        %v409 = vld [vmem:[#allocation7] sm:$0xf]
        %v410 = vld [vmem:[#allocation7 + $0x4] sm:$0xf]
        %v411 = vld [vmem:[#allocation7 + $0x8] sm:$0xf]
        %v412 = vld [vmem:[#allocation7 + $0xc] sm:$0xf]
        %v413 = vld [vmem:[%s4] sm:$0x1]
        %v415 = vperm.slane %v413, 0
        %v421 = vunpack.c.l.b16 %v409
        %v422 = vunpack.c.l.b16 %v410
        %v423 = vunpack.c.l.b16 %v411
        %v424 = vunpack.c.l.b16 %v412
        %v425 = vpack.c.b16 %v422, %v421
        %v426 = vpack.c.b16 %v424, %v423
        %v430 = vsel %vm370, %v408, 0
        %432 = vmatpush.bf16.msra.mxu0 0
        %433 = vmatpush.bf16.msra.mxu0 0
        %434 = vmatpush.bf16.msra.mxu0 0
        %435 = vmatpush.bf16.msra.mxu0 0
        %436 = vmatpush.bf16.msra.mxu0 0
        %437 = vmatpush.bf16.msra.mxu0 0
        %438 = vmatpush.bf16.msra.mxu0 %v426
        %439 = vmatpush.bf16.msra.mxu0 %v425
        %440 = vmatmul.bf16.gmra.mxu0 %v430
        %v441 = vpop.f32.mrf.mxu0
        %v442 = vadd.f32 %v415, %v441
        %v443 = vpop.f32.mrf.mxu0
        %444 = vdwg.mxu0
        %v445 = vpack.c.bf16 %v442, %v442
        %vm446 = vcmask 60416
        %447 = vst.msk [vmem:[%s351] sm:$0xf] %vm446, %v445
        %449 = vrot.lane.b32.xlu0 %v445, 96
        %v450 = vpop.permute.xlu0 %449
        %452 = vst.msk [vmem:[%s358] sm:$0xf] %vm446, %v450
        %453 = vrot.lane.b32.xlu0 %v445, 64
        %v454 = vpop.permute.xlu0 %453
        %456 = vst.msk [vmem:[%s365] sm:$0xf] %vm446, %v454
        %457 = vrot.lane.b32.xlu0 %v445, 120
        %v458 = vpop.permute.xlu0 %457
        %s460 = scalar_lea.vmem %s351, 4 [#allocation8]
        %461 = vst.msk [vmem:[%s460] sm:$0xf] %vm446, %v458
        %462 = vrot.lane.b32.xlu0 %v445, 88
        %v463 = vpop.permute.xlu0 %462
        %s465 = scalar_lea.vmem %s358, 4 [#allocation9]
        %466 = vst.msk [vmem:[%s465] sm:$0xf] %vm446, %v463
        %467 = vrot.lane.b32.xlu0 %v445, 56
        %v468 = vpop.permute.xlu0 %467
        %s470 = scalar_lea.vmem %s365, 4 [#allocation11]
        %471 = vst.msk [vmem:[%s470] sm:$0xf] %vm446, %v468
        %472 = vrot.lane.b32.xlu0 %v445, 112
        %v473 = vpop.permute.xlu0 %472
        %s475 = scalar_lea.vmem %s351, 8 [#allocation8]
        %476 = vst.msk [vmem:[%s475] sm:$0xf] %vm446, %v473
        %477 = vrot.lane.b32.xlu0 %v445, 80
        %v478 = vpop.permute.xlu0 %477
        %s480 = scalar_lea.vmem %s358, 8 [#allocation9]
        %481 = vst.msk [vmem:[%s480] sm:$0xf] %vm446, %v478
        %482 = vrot.lane.b32.xlu0 %v445, 48
        %v483 = vpop.permute.xlu0 %482
        %s485 = scalar_lea.vmem %s365, 8 [#allocation11]
        %486 = vst.msk [vmem:[%s485] sm:$0xf] %vm446, %v483
        %487 = vrot.lane.b32.xlu0 %v445, 104
        %v488 = vpop.permute.xlu0 %487
        %s490 = scalar_lea.vmem %s351, 12 [#allocation8]
        %491 = vst.msk [vmem:[%s490] sm:$0xf] %vm446, %v488
        %492 = vrot.lane.b32.xlu0 %v445, 72
        %v493 = vpop.permute.xlu0 %492
        %s495 = scalar_lea.vmem %s358, 12 [#allocation9]
        %496 = vst.msk [vmem:[%s495] sm:$0xf] %vm446, %v493
        %497 = vrot.lane.b32.xlu0 %v445, 40
        %v498 = vpop.permute.xlu0 %497
        %s500 = scalar_lea.vmem %s365, 12 [#allocation11]
        %501 = vst.msk [vmem:[%s500] sm:$0xf] %vm446, %v498
        %s502 = sand.u32 %s163, 1
        %s503 = scalar_lea.sflag [#allocation4], %s502
        %s504 = sand.u32 %s163, 1
        %s505 = smul.addr %s504, 16
        %s506 = scalar_lea.vmem [#allocation8], %s505
        %s507 = sand.u32 %s29, 1
        %s508 = scalar_lea.sflag [#allocation10], %s507
        %s509 = sand.u32 %s191, 1
        %s510 = smul.addr %s509, 16
        %s511 = scalar_lea.vmem [#allocation9], %s510
        %s512 = sand.u32 %s29, 1
        %s513 = scalar_lea.sflag [#allocation10], %s512
        %s514 = sand.u32 %s219, 1
        %s515 = smul.addr %s514, 16
        %s516 = scalar_lea.vmem [#allocation11], %s515
        // Predicated region
        $region53: #{tpu_custom_call.1} parent=39 // pred_check
          %p517 = pneg %p173
        $region54: #{tpu_custom_call.1} parent=39 // pred_check_branch
          %519 = sbr.rel (%p517) target = $region56
        $region55: #{tpu_custom_call.1} parent=39 // pred_region
          %521 = vsyncadd %s503, 0
          %s522 = smul.addr %s33, 4
          %s523 = sadd.s32 %s34, %s522
          %s524 = smul.addr %s523, 4
          %s525 = scalar_lea.hbm %s5, %s524
          %s526 = sshll.u32 %s506, 4
          %s527 = int_to_ptr.vmem [resolvable:$true] %s526
          %s528 = sshll.u32 %s525, 4
          %s529 = int_to_ptr.hbm [resolvable:$true] %s528
          %534 = dma.vmem_to_hbm [thread:$0]  %s527, 256, %s529, %s503, 64, 64, 4
        $region56: #{tpu_custom_call.1} parent=39 // pred_fallthru
          _
        // Predicated region
        $region57: #{tpu_custom_call.1} parent=39 // pred_check
          %p535 = pneg %p201
        $region58: #{tpu_custom_call.1} parent=39 // pred_check_branch
          %537 = sbr.rel (%p535) target = $region60
        $region59: #{tpu_custom_call.1} parent=39 // pred_region
          %539 = vsyncadd %s508, 0
          %s540 = smul.addr %s33, 4
          %s541 = sadd.s32 %s34, %s540
          %s542 = smul.addr %s541, 4
          %s543 = scalar_lea.hbm %s6, %s542
          %s544 = sshll.u32 %s511, 4
          %s545 = int_to_ptr.vmem [resolvable:$true] %s544
          %s546 = sshll.u32 %s543, 4
          %s547 = int_to_ptr.hbm [resolvable:$true] %s546
          %552 = dma.vmem_to_hbm [thread:$0]  %s545, 256, %s547, %s508, 64, 64, 4
        $region60: #{tpu_custom_call.1} parent=39 // pred_fallthru
          _
        // Predicated region
        $region61: #{tpu_custom_call.1} parent=39 // pred_check
          %p553 = pneg %p229
        $region62: #{tpu_custom_call.1} parent=39 // pred_check_branch
          %555 = sbr.rel (%p553) target = $region64
        $region63: #{tpu_custom_call.1} parent=39 // pred_region
          %557 = vsyncadd %s513, 0
          %s558 = smul.addr %s33, 4
          %s559 = sadd.s32 %s34, %s558
          %s560 = smul.addr %s559, 4
          %s561 = scalar_lea.hbm %s7, %s560
          %s562 = sshll.u32 %s516, 4
          %s563 = int_to_ptr.vmem [resolvable:$true] %s562
          %s564 = sshll.u32 %s561, 4
          %s565 = int_to_ptr.hbm [resolvable:$true] %s564
          %570 = dma.vmem_to_hbm [thread:$0]  %s563, 256, %s565, %s513, 64, 64, 4
        $region64: #{tpu_custom_call.1} parent=39 // pred_fallthru
          _
      $region40: #{tpu_custom_call.1} parent=5 // pred_fallthru
        _
      %p571 = scmp.le.s32.totalorder 2, %s24
      // Predicated region
      $region65: #{tpu_custom_call.1} parent=5 // pred_check
        %p572 = pneg %p571
      $region66: #{tpu_custom_call.1} parent=5 // pred_check_branch
        %574 = sbr.rel (%p572) target = $region68
      $region67: #{tpu_custom_call.1} parent=5 // pred_region
        %s575 = ssub.s32 %s24, 2
        // Predicated region
        $region69: #{tpu_custom_call.1} parent=67 // pred_check
          %p576 = pneg %p179
        $region70: #{tpu_custom_call.1} parent=67 // pred_check_branch
          %578 = sbr.rel (%p576) target = $region72
        $region71: #{tpu_custom_call.1} parent=67 // pred_region
          %s579 = sand.u32 %s164, 1
          %s580 = scalar_lea.sflag [#allocation4], %s579
          %s581 = sand.u32 %s164, 1
          %s582 = smul.addr %s581, 16
          %s583 = scalar_lea.vmem [#allocation8], %s582
          %585 = dma.done %s580, 256
        $region72: #{tpu_custom_call.1} parent=67 // pred_fallthru
          _
        // Predicated region
        $region73: #{tpu_custom_call.1} parent=67 // pred_check
          %p586 = pneg %p207
        $region74: #{tpu_custom_call.1} parent=67 // pred_check_branch
          %588 = sbr.rel (%p586) target = $region76
        $region75: #{tpu_custom_call.1} parent=67 // pred_region
          %s589 = sand.u32 %s30, 1
          %s590 = scalar_lea.sflag [#allocation10], %s589
          %s591 = sand.u32 %s192, 1
          %s592 = smul.addr %s591, 16
          %s593 = scalar_lea.vmem [#allocation9], %s592
          %595 = dma.done %s590, 256
        $region76: #{tpu_custom_call.1} parent=67 // pred_fallthru
          _
        // Predicated region
        $region77: #{tpu_custom_call.1} parent=67 // pred_check
          %p596 = pneg %p235
        $region78: #{tpu_custom_call.1} parent=67 // pred_check_branch
          %598 = sbr.rel (%p596) target = $region80
        $region79: #{tpu_custom_call.1} parent=67 // pred_region
          %s599 = sand.u32 %s30, 1
          %s600 = scalar_lea.sflag [#allocation10], %s599
          %s601 = sand.u32 %s220, 1
          %s602 = smul.addr %s601, 16
          %s603 = scalar_lea.vmem [#allocation11], %s602
          %605 = dma.done %s600, 256
        $region80: #{tpu_custom_call.1} parent=67 // pred_fallthru
          _
      $region68: #{tpu_custom_call.1} parent=5 // pred_fallthru
        _
    $region6: #{tpu_custom_call.1} parent=1 // loop_footer
      %s28 = sadd.s32 1, %s24
    $region7: #{tpu_custom_call.1} parent=1 // loop_footer_branch
      %23 = sbr.rel target = $region3
    $region8: #{tpu_custom_call.1} parent=1 // loop_exit
      _
    %606 = vsyncpa [#allocation3], 1
    %s607 = scalar_lea.sflag [#allocation3], 1
    %608 = vsyncpa %s607, 1
    %609 = vsyncpa [#allocation6], 1
    %610 = vsyncpa [#allocation4], 1
    %s611 = scalar_lea.sflag [#allocation4], 1
    %612 = vsyncpa %s611, 1
    %613 = vsyncpa [#allocation10], 1
    %s614 = scalar_lea.sflag [#allocation10], 1
    %615 = vsyncpa %s614, 1

</llo_original>
